<compile_context>
chip_gen: v6e
topology: v6e:2x2x1
jax: 0.10.0
libtpu: 0.0.40
codegen_flags: <defaults>
</compile_context>

<pallas_src>
import jax
import jax.numpy as jnp
from jax.experimental import pallas as pl
from jax.experimental.pallas import tpu as pltpu

LANE = 128            # lane width (fast axis)
ROW_TILE = 4096       # 4096*128*4B = 2 MiB/tile; 3 arrays x 2 bufs = 12 MiB
                      # resident -> fits v5e (16 MiB default) and v6e/v7x.
SPLIT_MIN_ROWS = 256  # above this, force >= 2 grid steps (v7x dual-TC sharding)


def _stable_sigmoid(x):
    # Numerically stable logistic: no overflow for very negative x.
    pos = 1.0 / (1.0 + jnp.exp(-x))
    e = jnp.exp(x)
    neg = e / (1.0 + e)
    return jnp.where(x >= 0, pos, neg)


def _mix_kernel(mix_ref, a_ref, b_ref, o_ref):
    # mix_ref: (1,) f32 in SMEM (raw, pre-sigmoid parameter).
    m = mix_ref[0]                                   # scalar f32
    mv = jnp.full((1, 1), m, dtype=jnp.float32)      # splat -> vector/EUP path
    sig = _stable_sigmoid(mv)                        # (1, 1) f32
    a = a_ref[...]
    b = b_ref[...]
    # Direct form (matches the reference formula); kernel is HBM-bound so the
    # extra VALU op vs b + sig*(a-b) is free and avoids cancellation concerns.
    o_ref[...] = (sig * a + (1.0 - sig) * b).astype(o_ref.dtype)


def _round_up(x, m):
    return ((x + m - 1) // m) * m


def _mix_pallas_2d(mix_smem, a2, b2, out_dtype):
    rows = a2.shape[0]
    if rows <= SPLIT_MIN_ROWS:
        # Small problem: one block covering the whole slab, no pipelining.
        block_rows = rows
    else:
        # >= 2 grid steps so v7x's two TensorCores both stream; capped at
        # ROW_TILE for big inputs. Multiple of 16 keeps bf16 tiling legal.
        block_rows = min(ROW_TILE, _round_up(pl.cdiv(rows, 2), 16))
    grid = (pl.cdiv(rows, block_rows),)

    n_elems = rows * LANE
    itemsize = jnp.dtype(out_dtype).itemsize
    cost = pl.CostEstimate(
        flops=3 * n_elems,
        transcendentals=2 * grid[0],
        bytes_accessed=3 * n_elems * itemsize,
    )

    # NOTE(correctness): when rows % block_rows != 0 the last grid step
    # over-runs the array. The kernel is purely elementwise, so any garbage
    # read past the edge only produces values in the masked/dropped OOB part
    # of the output tile. Do not add reductions over the tile without
    # revisiting this.
    return pl.pallas_call(
        _mix_kernel,
        out_shape=jax.ShapeDtypeStruct((rows, LANE), out_dtype),
        grid=grid,
        in_specs=[
            # Gate parameter: whole (1,) array lives in SMEM (scalar path).
            pl.BlockSpec(memory_space=pltpu.MemorySpace.SMEM),
            pl.BlockSpec((block_rows, LANE), lambda i: (i, 0)),   # A tile
            pl.BlockSpec((block_rows, LANE), lambda i: (i, 0)),   # B tile
        ],
        out_specs=pl.BlockSpec((block_rows, LANE), lambda i: (i, 0)),
        compiler_params=pltpu.CompilerParams(
            dimension_semantics=("parallel",)),
        cost_estimate=cost,
    )(mix_smem, a2, b2)


def mix_forward(mix_param, A, B):
    """sig = sigmoid(mix_param); return sig * A + (1 - sig) * B."""
    assert A.shape == B.shape and A.dtype == B.dtype
    orig_shape = A.shape
    n = A.size

    m32 = jnp.asarray(mix_param, dtype=jnp.float32).reshape(-1)[:1]

    # Below one lane row a Pallas launch is pure overhead -> plain (fusable)
    # XLA. (Production callers may raise this threshold; it is kept at one
    # lane row here so the demo shape exercises the kernel path.)
    if n < LANE:
        sig = _stable_sigmoid(m32)[0]
        return (sig * A + (1.0 - sig) * B).astype(A.dtype)

    a_flat = A.reshape(-1)
    b_flat = B.reshape(-1)

    # No jnp.pad: run the kernel on the 128-divisible prefix (zero-copy
    # reshape when n % 128 == 0) and blend any <128-element tail in plain JAX.
    n_main = (n // LANE) * LANE
    rows = n_main // LANE
    out_main = _mix_pallas_2d(
        m32,
        a_flat[:n_main].reshape(rows, LANE),
        b_flat[:n_main].reshape(rows, LANE),
        A.dtype,
    ).reshape(-1)

    if n_main == n:
        return out_main.reshape(orig_shape)

    sig = _stable_sigmoid(m32)[0]
    out_tail = (sig * a_flat[n_main:] + (1.0 - sig) * b_flat[n_main:]).astype(A.dtype)
    return jnp.concatenate([out_main, out_tail]).reshape(orig_shape)


if __name__ == "__main__":
    key = jax.random.PRNGKey(0)
    k_param, k_a, k_b = jax.random.split(key, 3)

    # nn.Parameter(torch.rand(1)) -> uniform [0, 1) scalar parameter.
    mix_param = jax.random.uniform(k_param, (1,), dtype=jnp.float32)

    # forward(x) with x = (A, B); NCHW-like small shapes.
    A = jax.random.normal(k_a, (2, 4, 16, 16), dtype=jnp.float32)
    B = jax.random.normal(k_b, (2, 4, 16, 16), dtype=jnp.float32)

    out = mix_forward(mix_param, A, B)
    out = jax.block_until_ready(out)

    # Reference check against plain JAX.
    sig = jax.nn.sigmoid(mix_param)[0]
    ref = sig * A + (1.0 - sig) * B
    assert out.shape == A.shape and out.dtype == A.dtype
    assert jnp.allclose(out, ref, atol=1e-6), "mismatch vs reference"

    print("KERNEL_OK")
</pallas_src>

<mosaic_0001>
module attributes {stable_mosaic.version = 11 : i64} {
  func.func @_mix_kernel(%arg0: i32, %arg1: memref<1xf32, #tpu.memory_space<smem>>, %arg2: memref<16x128xf32, #tpu.memory_space<vmem>>, %arg3: memref<16x128xf32, #tpu.memory_space<vmem>>, %arg4: memref<16x128xf32, #tpu.memory_space<vmem>>) attributes {dimension_semantics = [#tpu.dimension_semantics<parallel>], iteration_bounds = array<i64: 1>, scalar_prefetch = 0 : i64, scratch_operands = 0 : i64, tpu.core_type = #tpu.core_type<tc>, window_params = [{transform_indices = @transform_0, window_bounds = array<i64: 1>}, {transform_indices = @transform_1, window_bounds = array<i64: 16, 128>}, {transform_indices = @transform_2, window_bounds = array<i64: 16, 128>}, {transform_indices = @transform_3, window_bounds = array<i64: 16, 128>}]} {
    %c0 = arith.constant 0 : index
    %0 = memref.load %arg1[%c0] : memref<1xf32, #tpu.memory_space<smem>>
    %1 = vector.broadcast %0 : f32 to vector<1x1xf32>
    %cst = arith.constant 0.000000e+00 : f32
    %2 = vector.broadcast %cst : f32 to vector<1x1xf32>
    %3 = arith.subf %2, %1 : vector<1x1xf32>
    %4 = math.exp %3 : vector<1x1xf32>
    %cst_0 = arith.constant 1.000000e+00 : f32
    %5 = vector.broadcast %cst_0 : f32 to vector<1x1xf32>
    %6 = arith.addf %5, %4 : vector<1x1xf32>
    %cst_1 = arith.constant 1.000000e+00 : f32
    %7 = vector.broadcast %cst_1 : f32 to vector<1x1xf32>
    %8 = arith.divf %7, %6 : vector<1x1xf32>
    %9 = math.exp %1 : vector<1x1xf32>
    %cst_2 = arith.constant 1.000000e+00 : f32
    %10 = vector.broadcast %cst_2 : f32 to vector<1x1xf32>
    %11 = arith.addf %10, %9 : vector<1x1xf32>
    %12 = arith.divf %9, %11 : vector<1x1xf32>
    %cst_3 = arith.constant 0.000000e+00 : f32
    %13 = vector.broadcast %cst_3 : f32 to vector<1x1xf32>
    %14 = arith.cmpf oge, %1, %13 : vector<1x1xf32>
    %15 = arith.select %14, %8, %12 : vector<1x1xi1>, vector<1x1xf32>
    %c0_4 = arith.constant 0 : index
    %c0_5 = arith.constant 0 : index
    %16 = vector.load %arg2[%c0_4, %c0_5] : memref<16x128xf32, #tpu.memory_space<vmem>>, vector<16x128xf32>
    %c0_6 = arith.constant 0 : index
    %c0_7 = arith.constant 0 : index
    %17 = vector.load %arg3[%c0_6, %c0_7] : memref<16x128xf32, #tpu.memory_space<vmem>>, vector<16x128xf32>
    %18 = vector.broadcast %15 : vector<1x1xf32> to vector<16x128xf32>
    %19 = arith.mulf %18, %16 : vector<16x128xf32>
    %cst_8 = arith.constant 1.000000e+00 : f32
    %20 = vector.broadcast %cst_8 : f32 to vector<1x1xf32>
    %21 = arith.subf %20, %15 : vector<1x1xf32>
    %22 = vector.broadcast %21 : vector<1x1xf32> to vector<16x128xf32>
    %23 = arith.mulf %22, %17 : vector<16x128xf32>
    %24 = arith.addf %19, %23 : vector<16x128xf32>
    %c0_9 = arith.constant 0 : index
    %c0_10 = arith.constant 0 : index
    %25 = vector.load %arg4[%c0_9, %c0_10] : memref<16x128xf32, #tpu.memory_space<vmem>>, vector<16x128xf32>
    tpu.vector_store %arg4[%c0_9, %c0_10], %24 {strides = array<i32>} : memref<16x128xf32, #tpu.memory_space<vmem>>, vector<16x128xf32>,
    return
  }
  func.func @transform_0(%arg0: i32) -> i32 {
    %c0_i32 = arith.constant 0 : i32
    %c0_i32_0 = arith.constant 0 : i32
    return %c0_i32 : i32
  }
  func.func @transform_1(%arg0: i32) -> (i32, i32) {
    %c0_i32 = arith.constant 0 : i32
    %c0_i32_0 = arith.constant 0 : i32
    return %arg0, %c0_i32 : i32, i32
  }
  func.func @transform_2(%arg0: i32) -> (i32, i32) {
    %c0_i32 = arith.constant 0 : i32
    %c0_i32_0 = arith.constant 0 : i32
    return %arg0, %c0_i32 : i32, i32
  }
  func.func @transform_3(%arg0: i32) -> (i32, i32) {
    %c0_i32 = arith.constant 0 : i32
    %c0_i32_0 = arith.constant 0 : i32
    return %arg0, %c0_i32 : i32, i32
  }
}

</mosaic_0001>

<llo_original>
// kernel: tpu_custom_call.1
$region0: #{tpu_custom_call.1}
  #allocation0 [shape = 'u32[]', space=smem, size = 0x4, offset = 0x4, fixed_abs, tag = 'smem constant byte address 0x4 - core index']
  #allocation1 [shape = 'u32[144,128]{1,0:T(1,128)}', space=vmem, size = 0x12000, scoped, tag = 'internal scratch']
  #allocation2 [shape = 'f32[1]{0:T(128)S(6)}', space=smem, size = 0x200, scoped, tag = 'scoped memory for tpu_custom_call.1']
  %s0 = inlined_call_operand.<no memory space> [shape: f32[1], index: 0, kind: input, shape index: {}]
  %s1 = inlined_call_operand.hbm [shape: f32[16,128], index: 1, kind: input, shape index: {}]
  %s2 = inlined_call_operand.hbm [shape: f32[16,128], index: 2, kind: input, shape index: {}]
  %s3 = inlined_call_operand.hbm [shape: f32[16,128], index: 3, kind: output, shape index: {}]
  %s4 = sld [smem:[#allocation0]]
  $region30: #{tpu_custom_call.1} parent=0
    _
  %s6 = ssub.s32 1, %s4
  %s7 = scalar_select 0, %s6, %s4
  %8 = sst [smem:[#allocation2]] %s0
  $region1: #{tpu_custom_call.1} parent=0
    #allocation3 [shape = 'u8[8192]{0}', space=vmem, size = 0x2000, scoped, tag = 'input window, operand 1, single buffered']
    #allocation4 [shape = 's32[1]{0}', space=sflag, size = 0x4, scoped, tag = 'scoped memory for tpu_custom_call.1']
    #allocation5 [shape = 's32[1]{0}', space=sflag, size = 0x4, scoped, tag = 'scoped memory for tpu_custom_call.1']
    #allocation6 [shape = 'u8[8192]{0}', space=vmem, size = 0x2000, scoped, tag = 'input window, operand 2, single buffered']
    #allocation7 [shape = 's32[1]{0}', space=sflag, size = 0x4, scoped, tag = 'scoped memory for tpu_custom_call.1']
    #allocation8 [shape = 'u8[8192]{0}', space=vmem, size = 0x2000, scoped, tag = 'output window, operand 0, single buffered']
    %9 = vsyncpa [#allocation4], 0
    %10 = vsyncpa [#allocation7], 0
    %11 = vsyncpa [#allocation5], 0
    // Predicated region
    $region2: #{tpu_custom_call.1} parent=1 // pred_check
      _
    $region3: #{tpu_custom_call.1} parent=1 // pred_check_branch
      %13 = sbr.rel (0) target = $region5
    $region4: #{tpu_custom_call.1} parent=1 // pred_region
      _
    $region5: #{tpu_custom_call.1} parent=1 // pred_fallthru
      _
    // Predicated region
    $region6: #{tpu_custom_call.1} parent=1 // pred_check
      _
    $region7: #{tpu_custom_call.1} parent=1 // pred_check_branch
      %15 = sbr.rel (0) target = $region9
    $region8: #{tpu_custom_call.1} parent=1 // pred_region
      %s17 = ssub.s32 256, 256
      %18 = vsyncadd [#allocation4], %s17
      %s19 = sshll.u32 [#allocation3], 4
      %s20 = int_to_ptr.vmem [resolvable:$true] %s19
      %25 = dma.hbm_to_vmem [thread:$0]  %s1, 256, %s20, [#allocation4], 128, 128, 8
    $region9: #{tpu_custom_call.1} parent=1 // pred_fallthru
      _
    // Predicated region
    $region10: #{tpu_custom_call.1} parent=1 // pred_check
      _
    $region11: #{tpu_custom_call.1} parent=1 // pred_check_branch
      %27 = sbr.rel (0) target = $region13
    $region12: #{tpu_custom_call.1} parent=1 // pred_region
      %s29 = ssub.s32 256, 256
      %30 = vsyncadd [#allocation7], %s29
      %s31 = sshll.u32 [#allocation6], 4
      %s32 = int_to_ptr.vmem [resolvable:$true] %s31
      %37 = dma.hbm_to_vmem [thread:$0]  %s2, 256, %s32, [#allocation7], 128, 128, 8
    $region13: #{tpu_custom_call.1} parent=1 // pred_fallthru
      _
    // Predicated region
    $region14: #{tpu_custom_call.1} parent=1 // pred_check
      _
    $region15: #{tpu_custom_call.1} parent=1 // pred_check_branch
      %39 = sbr.rel (0) target = $region17
    $region16: #{tpu_custom_call.1} parent=1 // pred_region
      %40 = dma.done [#allocation4], 256
    $region17: #{tpu_custom_call.1} parent=1 // pred_fallthru
      _
    // Predicated region
    $region18: #{tpu_custom_call.1} parent=1 // pred_check
      _
    $region19: #{tpu_custom_call.1} parent=1 // pred_check_branch
      %42 = sbr.rel (0) target = $region21
    $region20: #{tpu_custom_call.1} parent=1 // pred_region
      %43 = dma.done [#allocation7], 256
    $region21: #{tpu_custom_call.1} parent=1 // pred_fallthru
      _
    %s44 = sld [smem:[#allocation2]]
    %v45 = vstv %s44
    %v46 = vsub.f32 0.0, %v45
    %v47 = vmul.f32 %v46, 1.442695
    %v48 = vpow.pop %v47
    %v49 = vadd.f32 %v48, 1.0
    %v50 = vrcp.pop %v49
    %v51 = vmul.f32 1.0, %v50
    %v52 = vmul.f32 %v45, 1.442695
    %v53 = vpow.pop %v52
    %v54 = vadd.f32 %v53, 1.0
    %v55 = vrcp.pop %v54
    %v56 = vmul.f32 %v53, %v55
    %vm57 = vcmp.ge.f32.partialorder %v45, 0.0
    %v58 = vsel %vm57, %v51, %v56
    %v59 = vld [vmem:[#allocation3] sm:$0xff]
    %v60 = vld [vmem:[#allocation3 + $0x8] sm:$0xff]
    %v61 = vld [vmem:[#allocation6] sm:$0xff]
    %v62 = vld [vmem:[#allocation6 + $0x8] sm:$0xff]
    %v63 = vmul.f32 %v58, %v59
    %v64 = vmul.f32 %v58, %v60
    %v65 = vsub.f32 1.0, %v58
    %v66 = vmul.f32 %v65, %v61
    %v67 = vmul.f32 %v65, %v62
    %v68 = vadd.f32 %v63, %v66
    %v69 = vadd.f32 %v64, %v67
    %70 = vst [vmem:[#allocation8] sm:$0xff] %v68
    %71 = vst [vmem:[#allocation8 + $0x8] sm:$0xff] %v69
    // Predicated region
    $region22: #{tpu_custom_call.1} parent=1 // pred_check
      _
    $region23: #{tpu_custom_call.1} parent=1 // pred_check_branch
      %73 = sbr.rel (0) target = $region25
    $region24: #{tpu_custom_call.1} parent=1 // pred_region
      %s75 = ssub.s32 256, 256
      %76 = vsyncadd [#allocation5], %s75
      %s77 = sshll.u32 [#allocation8], 4
      %s78 = int_to_ptr.vmem [resolvable:$true] %s77
      %83 = dma.vmem_to_hbm [thread:$0]  %s78, 256, %s3, [#allocation5], 128, 128, 8
    $region25: #{tpu_custom_call.1} parent=1 // pred_fallthru
      _
    // Predicated region
    $region26: #{tpu_custom_call.1} parent=1 // pred_check
      _
    $region27: #{tpu_custom_call.1} parent=1 // pred_check_branch
      %85 = sbr.rel (0) target = $region29
    $region28: #{tpu_custom_call.1} parent=1 // pred_region
      %86 = dma.done [#allocation5], 256
    $region29: #{tpu_custom_call.1} parent=1 // pred_fallthru
      _
    %87 = vsyncpa [#allocation4], 1
    %88 = vsyncpa [#allocation7], 1
    %89 = vsyncpa [#allocation5], 1

</llo_original>
